<compile_context>
chip_gen: v6e
topology: v6e:2x2x1
jax: 0.10.0
libtpu: 0.0.40
codegen_flags: <defaults>
</compile_context>

<pallas_src>
import numpy as np
import jax
import jax.numpy as jnp
from jax.experimental import pallas as pl
from jax.experimental.pallas import tpu as pltpu

N_BINS = 15
LANE = 128


def _make_ece_kernel(n_valid, c, tile_n, n_bins, n_inner):
    def kernel(logits_ref, labels_ref, out_ref, bin_acc_ref):
        o = pl.program_id(0)   # parallel chunk (megacore axis)
        i = pl.program_id(1)   # reduction step inside the chunk

        @pl.when(i == 0)
        def _init():
            bin_acc_ref[...] = jnp.zeros_like(bin_acc_ref)

        # (tile_n, c) tile straight from the (N, C) logits; transpose in-kernel
        # so samples land on the 128-wide lane axis (lane-dense compute).
        x = logits_ref[...].astype(jnp.float32)            # (tile_n, c)
        xt = x.T                                            # (c, tile_n)
        lbl = labels_ref[...]                               # (1, tile_n) int32

        # max softmax prob without materializing the softmax:
        #   conf = exp(m - m) / sum_j exp(x_j - m) = 1 / Z   (exact divide)
        m = jnp.max(xt, axis=0, keepdims=True)              # (1, tile_n)
        z = jnp.sum(jnp.exp(xt - m), axis=0, keepdims=True)
        conf = 1.0 / z                                      # (1, tile_n)

        # argmax over classes (first index attaining the max); softmax is
        # monotone so argmax of raw logits == argmax of probs.
        cls = jax.lax.broadcasted_iota(jnp.int32, (c, tile_n), 0)
        pred = jnp.min(jnp.where(xt >= m, cls, c), axis=0, keepdims=True)
        acc = (pred == lbl).astype(jnp.float32)             # (1, tile_n)

        # mask ragged tail / duplicated virtual tiles by global sample index;
        # jnp.where (not multiply) so garbage NaN/Inf cannot leak through.
        lane = jax.lax.broadcasted_iota(jnp.int32, (1, tile_n), 1)
        valid = ((o * n_inner + i) * tile_n + lane) < n_valid
        conf = jnp.where(valid, conf, 0.0)
        diff = jnp.where(valid, conf - acc, 0.0)            # (1, tile_n)

        # torch bin semantics (conf > b/n_bins) & (conf <= (b+1)/n_bins)
        #   <=>  bin = ceil(conf * n_bins) - 1   for conf in (0, 1].
        bin_idx = jnp.clip(jnp.ceil(conf * n_bins) - 1.0, 0.0, n_bins - 1.0)
        bin_idx = bin_idx.astype(jnp.int32)                 # (1, tile_n)
        bins = jax.lax.broadcasted_iota(jnp.int32, (n_bins, tile_n), 0)
        in_bin = bins == bin_idx                            # (n_bins, tile_n)

        # signed per-bin partial sums; sum_b |sum_in_bin(conf - acc)| / N is
        # identical to sum_b |avg_conf - acc| * prop_in_bin (empty bins -> 0).
        bin_acc_ref[...] += jnp.sum(jnp.where(in_bin, diff, 0.0),
                                    axis=1, keepdims=True)  # (n_bins, 1)

        @pl.when(i == n_inner - 1)
        def _finalize():
            out_ref[...] = bin_acc_ref[...].reshape(1, n_bins, 1)

    return kernel


def ece_loss(logits, labels, n_bins=N_BINS, tile_n=None, num_chunks=None):
    """Pallas implementation of _ECELoss.forward. Returns shape (1,) float32."""
    logits = jnp.asarray(logits)
    n, c = logits.shape
    labels2d = jnp.asarray(labels, jnp.int32).reshape(1, n)

    # Only pad when N is smaller than one lane width (negligible cost); large
    # inputs are never copied / padded / transposed in the wrapper.
    if n < LANE:
        pad = LANE - n
        logits = jnp.pad(logits, ((0, pad), (0, 0)))
        labels2d = jnp.pad(labels2d, ((0, 0), (0, pad)), constant_values=-1)
    n_arr = logits.shape[0]

    # Generation-aware VMEM budgeting (v7x has 64 MiB/TC vs 128 MiB v5e/v6e).
    try:
        vmem_cap = int(pltpu.get_tpu_info().vmem_capacity_bytes)
    except Exception:
        vmem_cap = 64 * 1024 * 1024
    vmem_limit = int(min(max(vmem_cap // 2, 16 * 1024 * 1024), 96 * 1024 * 1024))

    itemsize = jnp.dtype(logits.dtype).itemsize
    c_lanes = ((c + LANE - 1) // LANE) * LANE     # VMEM lane padding of the C axis
    if tile_n is None:
        budget = min(vmem_limit // 8, 4 * 1024 * 1024)   # per (double-buffered) block
        tile_n = budget // (c_lanes * itemsize)
    tile_n = max(LANE, (int(tile_n) // LANE) * LANE)
    tile_n = min(tile_n, max(LANE, (n_arr // LANE) * LANE))

    n_tiles = pl.cdiv(n_arr, tile_n)
    if num_chunks is None:
        # TODO(synk): query the actual TensorCore count; 2 covers v7x megacore.
        num_chunks = 2 if n_tiles >= 2 else 1
    num_chunks = max(1, min(int(num_chunks), n_tiles))
    n_inner = pl.cdiv(n_tiles, num_chunks)

    def _tile_idx(o, i):
        # clamp duplicated trailing virtual tiles; their samples are masked.
        return jnp.minimum(o * n_inner + i, n_tiles - 1)

    kernel = _make_ece_kernel(n, c, tile_n, n_bins, n_inner)

    out = pl.pallas_call(
        kernel,
        out_shape=jax.ShapeDtypeStruct((num_chunks, n_bins, 1), jnp.float32),
        grid_spec=pltpu.PrefetchScalarGridSpec(
            num_scalar_prefetch=0,
            grid=(num_chunks, n_inner),
            in_specs=[
                pl.BlockSpec((tile_n, c), lambda o, i: (_tile_idx(o, i), 0)),
                pl.BlockSpec((1, tile_n), lambda o, i: (0, _tile_idx(o, i))),
            ],
            out_specs=pl.BlockSpec((1, n_bins, 1), lambda o, i: (o, 0, 0)),
            scratch_shapes=[pltpu.VMEM((n_bins, 1), jnp.float32)],
        ),
        compiler_params=pltpu.CompilerParams(
            # outer chunk axis parallel (v7x dual-TC), reduction axis arbitrary
            dimension_semantics=("parallel", "arbitrary"),
            vmem_limit_bytes=vmem_limit,
        ),
    )(logits, labels2d)

    # combine per-chunk signed per-bin sums, then abs-sum and normalize by N.
    bin_sums = jnp.sum(out[:, :, 0], axis=0)                 # (n_bins,)
    ece = jnp.sum(jnp.abs(bin_sums)) / np.float32(n)
    return ece.reshape(1)


def _ece_reference(logits, labels, n_bins=N_BINS):
    """Pure-JAX reference mirroring the PyTorch module."""
    probs = jax.nn.softmax(jnp.asarray(logits, jnp.float32), axis=1)
    conf = jnp.max(probs, axis=1)
    pred = jnp.argmax(probs, axis=1)
    acc = (pred == labels).astype(jnp.float32)
    bounds = np.linspace(0.0, 1.0, n_bins + 1)
    ece = jnp.zeros((1,), jnp.float32)
    n = logits.shape[0]
    for lo, hi in zip(bounds[:-1], bounds[1:]):
        in_bin = jnp.logical_and(conf > lo, conf <= hi).astype(jnp.float32)
        count = jnp.sum(in_bin)
        safe = jnp.maximum(count, 1.0)
        gap = jnp.abs(jnp.sum(conf * in_bin) / safe - jnp.sum(acc * in_bin) / safe)
        ece = ece + jnp.where(count > 0.0, gap * count / n, 0.0)
    return ece


if __name__ == "__main__":
    key = jax.random.PRNGKey(0)
    k1, k2, k3, k4, k5, k6 = jax.random.split(key, 6)

    # Case 1: single tile (N=128, C=16)
    N, C = 128, 16
    logits = jax.random.normal(k1, (N, C), jnp.float32) * 3.0
    labels = jax.random.randint(k2, (N,), 0, C, dtype=jnp.int32)
    out = ece_loss(logits, labels)
    jax.block_until_ready(out)
    assert out.shape == (1,)
    np.testing.assert_allclose(np.asarray(out), np.asarray(_ece_reference(logits, labels)),
                               rtol=1e-5, atol=1e-6)

    # Case 2: 3 tiles split across 2 parallel chunks, ragged + duplicated tile masked
    N2, C2 = 300, 16
    logits2 = jax.random.normal(k3, (N2, C2), jnp.float32) * 2.0
    labels2 = jax.random.randint(k4, (N2,), 0, C2, dtype=jnp.int32)
    out2 = ece_loss(logits2, labels2, tile_n=128)
    jax.block_until_ready(out2)
    np.testing.assert_allclose(np.asarray(out2), np.asarray(_ece_reference(logits2, labels2)),
                               rtol=1e-5, atol=1e-6)

    # Case 3: default (large) tile sizing, odd class count, ragged tail
    N3, C3 = 2000, 10
    logits3 = jax.random.normal(k5, (N3, C3), jnp.float32) * 2.5
    labels3 = jax.random.randint(k6, (N3,), 0, C3, dtype=jnp.int32)
    out3 = ece_loss(logits3, labels3)
    jax.block_until_ready(out3)
    np.testing.assert_allclose(np.asarray(out3), np.asarray(_ece_reference(logits3, labels3)),
                               rtol=1e-5, atol=1e-6)

    print("KERNEL_OK")
</pallas_src>

<mosaic_0001>
module attributes {stable_mosaic.version = 11 : i64} {
  func.func @kernel(%arg0: i32, %arg1: i32, %arg2: memref<128x16xf32, #tpu.memory_space<vmem>>, %arg3: memref<1x128xi32, #tpu.memory_space<vmem>>, %arg4: memref<1x15x1xf32, #tpu.memory_space<vmem>>, %arg5: memref<15x1xf32, #tpu.memory_space<vmem>>) attributes {dimension_semantics = [#tpu.dimension_semantics<parallel>, #tpu.dimension_semantics<arbitrary>], iteration_bounds = array<i64: 1, 1>, scalar_prefetch = 0 : i64, scratch_operands = 1 : i64, tpu.core_type = #tpu.core_type<tc>, window_params = [{transform_indices = @transform_0, window_bounds = array<i64: 128, 16>}, {transform_indices = @transform_1, window_bounds = array<i64: 1, 128>}, {transform_indices = @transform_2, window_bounds = array<i64: 1, 15, 1>}]} {
    %c0_i32 = arith.constant 0 : i32
    %0 = arith.cmpi eq, %arg1, %c0_i32 : i32
    %1 = arith.extui %0 : i1 to i32
    %c0_i32_0 = arith.constant 0 : i32
    %2 = arith.cmpi ne, %1, %c0_i32_0 : i32
    scf.if %2 {
      %cst_22 = arith.constant 0.000000e+00 : f32
      %63 = vector.broadcast %cst_22 : f32 to vector<15x1xf32>
      %c0_23 = arith.constant 0 : index
      %c0_24 = arith.constant 0 : index
      %64 = vector.load %arg5[%c0_23, %c0_24] : memref<15x1xf32, #tpu.memory_space<vmem>>, vector<15x1xf32>
      tpu.vector_store %arg5[%c0_23, %c0_24], %63 {strides = array<i32>} : memref<15x1xf32, #tpu.memory_space<vmem>>, vector<15x1xf32>,
    } else {
    }
    %c0 = arith.constant 0 : index
    %c0_1 = arith.constant 0 : index
    %3 = vector.load %arg2[%c0, %c0_1] : memref<128x16xf32, #tpu.memory_space<vmem>>, vector<128x16xf32>
    %4 = tpu.transpose %3, [1, 0] : vector<128x16xf32> -> vector<16x128xf32>
    %c0_2 = arith.constant 0 : index
    %c0_3 = arith.constant 0 : index
    %5 = vector.load %arg3[%c0_2, %c0_3] : memref<1x128xi32, #tpu.memory_space<vmem>>, vector<1x128xi32>
    %cst = arith.constant dense<0xFF800000> : vector<128xf32>
    %6 = vector.multi_reduction <maximumf>, %4, %cst [0] : vector<16x128xf32> to vector<128xf32>
    %7 = vector.shape_cast %6 : vector<128xf32> to vector<1x128xf32>
    %8 = vector.broadcast %7 : vector<1x128xf32> to vector<16x128xf32>
    %9 = arith.subf %4, %8 : vector<16x128xf32>
    %10 = math.exp %9 : vector<16x128xf32>
    %cst_4 = arith.constant dense<0.000000e+00> : vector<128xf32>
    %11 = vector.multi_reduction <add>, %10, %cst_4 [0] : vector<16x128xf32> to vector<128xf32>
    %12 = vector.shape_cast %11 : vector<128xf32> to vector<1x128xf32>
    %cst_5 = arith.constant 1.000000e+00 : f32
    %13 = vector.broadcast %cst_5 : f32 to vector<1x128xf32>
    %14 = arith.divf %13, %12 : vector<1x128xf32>
    %15 = tpu.iota {dimensions = array<i32: 0>} : vector<16x128xi32>
    %16 = vector.broadcast %7 : vector<1x128xf32> to vector<16x128xf32>
    %17 = arith.cmpf oge, %4, %16 : vector<16x128xf32>
    %c16_i32 = arith.constant 16 : i32
    %18 = vector.broadcast %c16_i32 : i32 to vector<16x128xi32>
    %19 = arith.select %17, %15, %18 : vector<16x128xi1>, vector<16x128xi32>
    %cst_6 = arith.constant dense<2147483647> : vector<128xi32>
    %20 = vector.multi_reduction <minsi>, %19, %cst_6 [0] : vector<16x128xi32> to vector<128xi32>
    %21 = vector.shape_cast %20 : vector<128xi32> to vector<1x128xi32>
    %22 = arith.cmpi eq, %21, %5 : vector<1x128xi32>
    %23 = arith.extui %22 : vector<1x128xi1> to vector<1x128xi32>
    %24 = arith.sitofp %23 : vector<1x128xi32> to vector<1x128xf32>
    %25 = tpu.iota {dimensions = array<i32: 1>} : vector<1x128xi32>
    %c1_i32 = arith.constant 1 : i32
    %26 = arith.muli %arg0, %c1_i32 : i32
    %27 = arith.addi %26, %arg1 : i32
    %c128_i32 = arith.constant 128 : i32
    %28 = arith.muli %27, %c128_i32 : i32
    %29 = vector.broadcast %28 : i32 to vector<1x128xi32>
    %30 = arith.addi %29, %25 : vector<1x128xi32>
    %c128_i32_7 = arith.constant 128 : i32
    %31 = vector.broadcast %c128_i32_7 : i32 to vector<1x128xi32>
    %32 = arith.cmpi slt, %30, %31 : vector<1x128xi32>
    %cst_8 = arith.constant 0.000000e+00 : f32
    %33 = vector.broadcast %cst_8 : f32 to vector<1x128xf32>
    %34 = arith.select %32, %14, %33 : vector<1x128xi1>, vector<1x128xf32>
    %35 = arith.subf %34, %24 : vector<1x128xf32>
    %cst_9 = arith.constant 0.000000e+00 : f32
    %36 = vector.broadcast %cst_9 : f32 to vector<1x128xf32>
    %37 = arith.select %32, %35, %36 : vector<1x128xi1>, vector<1x128xf32>
    %cst_10 = arith.constant 1.500000e+01 : f32
    %38 = vector.broadcast %cst_10 : f32 to vector<1x128xf32>
    %39 = arith.mulf %34, %38 : vector<1x128xf32>
    %40 = math.ceil %39 : vector<1x128xf32>
    %cst_11 = arith.constant 1.000000e+00 : f32
    %41 = vector.broadcast %cst_11 : f32 to vector<1x128xf32>
    %42 = arith.subf %40, %41 : vector<1x128xf32>
    %cst_12 = arith.constant 0.000000e+00 : f32
    %cst_13 = arith.constant 1.400000e+01 : f32
    %43 = vector.broadcast %cst_12 : f32 to vector<1x128xf32>
    %44 = arith.maximumf %43, %42 : vector<1x128xf32>
    %45 = vector.broadcast %cst_13 : f32 to vector<1x128xf32>
    %46 = arith.minimumf %45, %44 : vector<1x128xf32>
    %47 = arith.fptosi %46 : vector<1x128xf32> to vector<1x128xi32>
    %48 = tpu.iota {dimensions = array<i32: 0>} : vector<15x128xi32>
    %49 = vector.broadcast %47 : vector<1x128xi32> to vector<15x128xi32>
    %50 = arith.cmpi eq, %48, %49 : vector<15x128xi32>
    %c0_14 = arith.constant 0 : index
    %c0_15 = arith.constant 0 : index
    %51 = vector.load %arg5[%c0_14, %c0_15] : memref<15x1xf32, #tpu.memory_space<vmem>>, vector<15x1xf32>
    %cst_16 = arith.constant 0.000000e+00 : f32
    %52 = vector.shape_cast %37 : vector<1x128xf32> to vector<1x128xf32>
    %53 = vector.broadcast %52 : vector<1x128xf32> to vector<15x128xf32>
    %54 = vector.broadcast %cst_16 : f32 to vector<15x128xf32>
    %55 = arith.select %50, %53, %54 : vector<15x128xi1>, vector<15x128xf32>
    %cst_17 = arith.constant dense<0.000000e+00> : vector<15xf32>
    %56 = vector.multi_reduction <add>, %55, %cst_17 [1] : vector<15x128xf32> to vector<15xf32>
    %57 = vector.shape_cast %56 : vector<15xf32> to vector<15x1xf32>
    %58 = arith.addf %51, %57 : vector<15x1xf32>
    %c0_18 = arith.constant 0 : index
    %c0_19 = arith.constant 0 : index
    %59 = vector.load %arg5[%c0_18, %c0_19] : memref<15x1xf32, #tpu.memory_space<vmem>>, vector<15x1xf32>
    tpu.vector_store %arg5[%c0_18, %c0_19], %58 {strides = array<i32>} : memref<15x1xf32, #tpu.memory_space<vmem>>, vector<15x1xf32>,
    %c0_i32_20 = arith.constant 0 : i32
    %60 = arith.cmpi eq, %arg1, %c0_i32_20 : i32
    %61 = arith.extui %60 : i1 to i32
    %c0_i32_21 = arith.constant 0 : i32
    %62 = arith.cmpi ne, %61, %c0_i32_21 : i32
    scf.if %62 {
      %c0_22 = arith.constant 0 : index
      %c0_23 = arith.constant 0 : index
      %63 = vector.load %arg5[%c0_22, %c0_23] : memref<15x1xf32, #tpu.memory_space<vmem>>, vector<15x1xf32>
      %64 = vector.shape_cast %63 : vector<15x1xf32> to vector<1x15x1xf32>
      %c0_24 = arith.constant 0 : index
      %c0_25 = arith.constant 0 : index
      %c0_26 = arith.constant 0 : index
      %65 = vector.load %arg4[%c0_24, %c0_25, %c0_26] : memref<1x15x1xf32, #tpu.memory_space<vmem>>, vector<1x15x1xf32>
      tpu.vector_store %arg4[%c0_24, %c0_25, %c0_26], %64 {strides = array<i32>} : memref<1x15x1xf32, #tpu.memory_space<vmem>>, vector<1x15x1xf32>,
    } else {
    }
    return
  }
  func.func @transform_0(%arg0: i32, %arg1: i32) -> (i32, i32) {
    %c1_i32 = arith.constant 1 : i32
    %0 = arith.muli %arg0, %c1_i32 : i32
    %1 = arith.addi %0, %arg1 : i32
    %c0_i32 = arith.constant 0 : i32
    %2 = arith.minsi %1, %c0_i32 : i32
    %c0_i32_0 = arith.constant 0 : i32
    %c0_i32_1 = arith.constant 0 : i32
    return %2, %c0_i32_0 : i32, i32
  }
  func.func @transform_1(%arg0: i32, %arg1: i32) -> (i32, i32) {
    %c1_i32 = arith.constant 1 : i32
    %0 = arith.muli %arg0, %c1_i32 : i32
    %1 = arith.addi %0, %arg1 : i32
    %c0_i32 = arith.constant 0 : i32
    %2 = arith.minsi %1, %c0_i32 : i32
    %c0_i32_0 = arith.constant 0 : i32
    %c0_i32_1 = arith.constant 0 : i32
    return %c0_i32_0, %2 : i32, i32
  }
  func.func @transform_2(%arg0: i32, %arg1: i32) -> (i32, i32, i32) {
    %c0_i32 = arith.constant 0 : i32
    %c0_i32_0 = arith.constant 0 : i32
    %c0_i32_1 = arith.constant 0 : i32
    return %arg0, %c0_i32, %c0_i32_0 : i32, i32, i32
  }
}

</mosaic_0001>

<llo_original>
// kernel: tpu_custom_call.1
$region0: #{tpu_custom_call.1}
  #allocation0 [shape = 'u32[]', space=smem, size = 0x4, offset = 0x4, fixed_abs, tag = 'smem constant byte address 0x4 - core index']
  #allocation1 [shape = 'u32[144,128]{1,0:T(1,128)}', space=vmem, size = 0x12000, scoped, tag = 'internal scratch']
  #allocation2 [shape = 'f32[15,1]{1,0:T(8,128)}', space=vmem, size = 0x2000, scoped, tag = 'scratch operand']
  %s0 = inlined_call_operand.vmem [shape: f32[128,16], index: 0, kind: input, shape index: {}]
  %s1 = inlined_call_operand.vmem [shape: s32[1,128], index: 1, kind: input, shape index: {}]
  %s2 = inlined_call_operand.vmem [shape: f32[1,15,1], index: 2, kind: output, shape index: {}]
  %s3 = sld [smem:[#allocation0]]
  $region26: #{tpu_custom_call.1} parent=0
    _
  %s5 = ssub.s32 1, %s3
  %s6 = scalar_select 0, %s5, %s3
  // Predicated region
  $region2: #{tpu_custom_call.1} parent=0 // pred_check
    _
  $region3: #{tpu_custom_call.1} parent=0 // pred_check_branch
    %8 = sbr.rel (0) target = $region5
  $region4: #{tpu_custom_call.1} parent=0 // pred_region
    %s9 = sadd.s32 0, 0
    %p10 = scmp.lt.s32.totalorder %s9, 0
    %s11 = scalar_select %p10, %s9, 0
    %s12 = smul.u32 16, %s11
    %p13 = scmp.lt.s32.totalorder %s12, 15
    %s14 = scalar_select %p13, %s12, 15
    %s15 = smul.addr %s14, 8
    %s16 = scalar_lea.vmem %s0, %s15
    %s17 = sadd.s32 0, 0
    %p18 = scmp.lt.s32.totalorder %s17, 0
    %s19 = scalar_select %p18, %s17, 0
    %s20 = smul.u32 16, %s19
  $region5: #{tpu_custom_call.1} parent=0 // pred_fallthru
    _
  // Predicated region
  $region6: #{tpu_custom_call.1} parent=0 // pred_check
    _
  $region7: #{tpu_custom_call.1} parent=0 // pred_check_branch
    %22 = sbr.rel (0) target = $region9
  $region8: #{tpu_custom_call.1} parent=0 // pred_region
    %s23 = sadd.s32 0, 0
    %p24 = scmp.lt.s32.totalorder %s23, 0
    %s25 = scalar_select %p24, %s23, 0
    %p26 = scmp.lt.s32.totalorder %s25, 0
    %s27 = scalar_select %p26, %s25, 0
    %s28 = scalar_lea.vmem %s1, %s27
    %s29 = sadd.s32 0, 0
    %p30 = scmp.lt.s32.totalorder %s29, 0
    %s31 = scalar_select %p30, %s29, 0
  $region9: #{tpu_custom_call.1} parent=0 // pred_fallthru
    _
  %s32 = sadd.s32 0, 0
  %p33 = scmp.lt.s32.totalorder %s32, 0
  %s34 = scalar_select %p33, %s32, 0
  %s35 = smul.u32 16, %s34
  %p36 = scmp.lt.s32.totalorder %s35, 15
  %s37 = scalar_select %p36, %s35, 15
  %s38 = smul.addr %s37, 8
  %s39 = scalar_lea.vmem %s0, %s38
  %s40 = sadd.s32 0, 0
  %p41 = scmp.lt.s32.totalorder %s40, 0
  %s42 = scalar_select %p41, %s40, 0
  %p43 = scmp.lt.s32.totalorder %s42, 0
  %s44 = scalar_select %p43, %s42, 0
  %s45 = scalar_lea.vmem %s1, %s44
  %s46 = sadd.s32 0, 0
  %p47 = scmp.lt.s32.totalorder %s46, 0
  %s48 = scalar_select %p47, %s46, 0
  %s49 = smul.u32 16, %s48
  %p50 = scmp.lt.s32.totalorder %s49, 15
  %s51 = scalar_select %p50, %s49, 15
  %s52 = smul.addr %s51, 8
  %s53 = scalar_lea.vmem %s0, %s52
  %s54 = sadd.s32 0, 0
  %p55 = scmp.lt.s32.totalorder %s54, 0
  %s56 = scalar_select %p55, %s54, 0
  %s57 = smul.u32 16, %s56
  %s58 = sadd.s32 0, 0
  %p59 = scmp.lt.s32.totalorder %s58, 0
  %s60 = scalar_select %p59, %s58, 0
  %p61 = scmp.lt.s32.totalorder %s60, 0
  %s62 = scalar_select %p61, %s60, 0
  %s63 = scalar_lea.vmem %s1, %s62
  %s64 = sadd.s32 0, 0
  %p65 = scmp.lt.s32.totalorder %s64, 0
  %s66 = scalar_select %p65, %s64, 0
  %p67 = scmp.eq.s32.totalorder 0, 0
  // Predicated region
  $region10: #{tpu_custom_call.1} parent=0 // pred_check
    %p68 = pneg %p67
  $region11: #{tpu_custom_call.1} parent=0 // pred_check_branch
    %70 = sbr.rel (%p68) target = $region13
  $region12: #{tpu_custom_call.1} parent=0 // pred_region
    %vm71 = vcmask 7168
    %72 = vst.msk [vmem:[#allocation2] sm:$0xff] %vm71, 0.0
    %vm73 = vcmask 6144
    %74 = vst.msk [vmem:[#allocation2 + $0x8] sm:$0x7f] %vm73, 0.0
  $region13: #{tpu_custom_call.1} parent=0 // pred_fallthru
    _
  %v75 = vld [vmem:[%s53] sm:$0xff]
  %v76 = vld [vmem:[%s53 + $0x8] sm:$0xff]
  %v77 = vld [vmem:[%s53 + $0x10] sm:$0xff]
  %v78 = vld [vmem:[%s53 + $0x18] sm:$0xff]
  %v79 = vld [vmem:[%s53 + $0x20] sm:$0xff]
  %v80 = vld [vmem:[%s53 + $0x28] sm:$0xff]
  %v81 = vld [vmem:[%s53 + $0x30] sm:$0xff]
  %v82 = vld [vmem:[%s53 + $0x38] sm:$0xff]
  %v83 = vld [vmem:[%s53 + $0x40] sm:$0xff]
  %v84 = vld [vmem:[%s53 + $0x48] sm:$0xff]
  %v85 = vld [vmem:[%s53 + $0x50] sm:$0xff]
  %v86 = vld [vmem:[%s53 + $0x58] sm:$0xff]
  %v87 = vld [vmem:[%s53 + $0x60] sm:$0xff]
  %v88 = vld [vmem:[%s53 + $0x68] sm:$0xff]
  %v89 = vld [vmem:[%s53 + $0x70] sm:$0xff]
  %v90 = vld [vmem:[%s53 + $0x78] sm:$0xff]
  %91 = vxpose.xlu0.b32.start [1/16] %v75, 128
  %92 = vxpose.xlu0.b32.cont [2/16] %v76, 128
  %93 = vxpose.xlu0.b32.cont [3/16] %v77, 128
  %94 = vxpose.xlu0.b32.cont [4/16] %v78, 128
  %95 = vxpose.xlu0.b32.cont [5/16] %v79, 128
  %96 = vxpose.xlu0.b32.cont [6/16] %v80, 128
  %97 = vxpose.xlu0.b32.cont [7/16] %v81, 128
  %98 = vxpose.xlu0.b32.cont [8/16] %v82, 128
  %99 = vxpose.xlu0.b32.cont [9/16] %v83, 128
  %100 = vxpose.xlu0.b32.cont [10/16] %v84, 128
  %101 = vxpose.xlu0.b32.cont [11/16] %v85, 128
  %102 = vxpose.xlu0.b32.cont [12/16] %v86, 128
  %103 = vxpose.xlu0.b32.cont [13/16] %v87, 128
  %104 = vxpose.xlu0.b32.cont [14/16] %v88, 128
  %105 = vxpose.xlu0.b32.cont [15/16] %v89, 128
  %106 = vxpose.xlu0.b32.end [16/16] %v90, 128
  %v107 = vpop.trf.xlu0
  %v108 = vpop.trf.xlu0
  %v109 = vpop.trf.xlu0
  %v110 = vpop.trf.xlu0
  %v111 = vpop.trf.xlu0
  %v112 = vpop.trf.xlu0
  %v113 = vpop.trf.xlu0
  %v114 = vpop.trf.xlu0
  %v115 = vpop.trf.xlu0
  %v116 = vpop.trf.xlu0
  %v117 = vpop.trf.xlu0
  %v118 = vpop.trf.xlu0
  %v119 = vpop.trf.xlu0
  %v120 = vpop.trf.xlu0
  %v121 = vpop.trf.xlu0
  %v122 = vpop.trf.xlu0
  %v123 = vld [vmem:[%s63] sm:$0x1]
  %v124 = vmax.f32 %v107, %v108
  %v125 = vrot.slane %v124, 4
  %v126 = vmax.f32 %v124, %v125
  %v127 = vrot.slane %v126, 2
  %v128 = vmax.f32 %v126, %v127
  %v129 = vrot.slane %v128, 1
  %v130 = vmax.f32 %v128, %v129
  %v131 = vsub.f32 %v107, %v130
  %v132 = vsub.f32 %v108, %v130
  %v133 = vmul.f32 %v131, 1.442695
  %v134 = vpow.pop %v133
  %v135 = vmul.f32 %v132, 1.442695
  %v136 = vpow.pop %v135
  %v137 = vadd.f32 %v134, %v136
  %v138 = vrot.slane %v137, 4
  %v139 = vadd.f32 %v137, %v138
  %v140 = vrot.slane %v139, 2
  %v141 = vadd.f32 %v139, %v140
  %v142 = vrot.slane %v141, 1
  %v143 = vadd.f32 %v141, %v142
  %v144 = vrcp.pop %v143
  %v145 = vmul.f32 1.0, %v144
  %v146 = vlaneseq
  %v147 = vshrl.u32 %v146, 7
  %v148 = vadd.s32 %v147, 8
  %vm149 = vcmp.ge.f32.partialorder %v107, %v130
  %vm150 = vcmp.ge.f32.partialorder %v108, %v130
  %v151 = vsel %vm149, %v147, 16
  %v152 = vsel %vm150, %v148, 16
  %vm153 = vcmp.lt.s32.totalorder %v151, %v152
  %v154 = vsel %vm153, %v151, %v152
  %v155 = vrot.slane %v154, 4
  %vm156 = vcmp.lt.s32.totalorder %v154, %v155
  %v157 = vsel %vm156, %v154, %v155
  %v158 = vrot.slane %v157, 2
  %vm159 = vcmp.lt.s32.totalorder %v157, %v158
  %v160 = vsel %vm159, %v157, %v158
  %v161 = vrot.slane %v160, 1
  %vm162 = vcmp.lt.s32.totalorder %v160, %v161
  %v163 = vsel %vm162, %v160, %v161
  %vm164 = vcmp.eq.s32.totalorder %v163, %v123
  %v165 = vsel %vm164, 1, 0
  %v166 = vcvt.s32.f32 %v165
  %v167 = vlaneseq
  %v168 = vand.u32 %v167, 127
  %s169 = sadd.s32 0, 0
  %s170 = smul.u32 %s169, 128
  %v171 = vstv %s170
  %v172 = vadd.s32 %v171, %v168
  %vm173 = vcmp.lt.s32.totalorder %v172, 128
  %v174 = vsel %vm173, %v145, 0.0
  %v175 = vsub.f32 %v174, %v166
  %v176 = vsel %vm173, %v175, 0.0
  %v177 = vmul.f32 %v174, 15.0
  %v178 = vceil.f32 %v177
  %v179 = vsub.f32 %v178, 1.0
  %v180 = vmax.f32 %v179, 0.0
  %v181 = vmin.f32 %v180, 14.0
  %v182 = vcvt.f32.s32.to.zero.pseudo %v181
  %vm183 = vcmp.eq.s32.totalorder %v147, %v182
  %vm184 = vcmp.eq.s32.totalorder %v148, %v182
  %v185 = vld [vmem:[#allocation2] sm:$0xff]
  %v186 = vld [vmem:[#allocation2 + $0x8] sm:$0x7f]
  %v187 = vlaneseq
  %v188 = vshrl.u32 %v187, 7
  %v189 = vsub.s32 0, %v188
  %v190 = vrot.slane %v176, %v189
  %v191 = vsel %vm183, %v190, 0.0
  %v192 = vsel %vm184, %v190, 0.0
  %193 = vadd.xlane.f32.xlu0 %v191
  %v194 = vpop.xlane.xlu0 %193
  %vm195 = vcmask 1046528
  %v196 = vsel %vm195, %v192, 0.0
  %197 = vadd.xlane.f32.xlu0 %v196
  %v198 = vpop.xlane.xlu0 %197
  %v199 = vadd.f32 %v185, %v194
  %v200 = vadd.f32 %v186, %v198
  %vm201 = vcmask 7168
  %202 = vst.msk [vmem:[#allocation2] sm:$0xff] %vm201, %v199
  %vm203 = vcmask 6144
  %204 = vst.msk [vmem:[#allocation2 + $0x8] sm:$0x7f] %vm203, %v200
  // Predicated region
  $region14: #{tpu_custom_call.1} parent=0 // pred_check
    %p205 = pneg %p67
  $region15: #{tpu_custom_call.1} parent=0 // pred_check_branch
    %207 = sbr.rel (%p205) target = $region17
  $region16: #{tpu_custom_call.1} parent=0 // pred_region
    %v208 = vld [vmem:[#allocation2] sm:$0xff]
    %v209 = vld [vmem:[#allocation2 + $0x8] sm:$0x7f]
    %210 = vst.msk [vmem:[%s2] sm:$0xff] %vm201, %v208
    %211 = vst.msk [vmem:[%s2 + $0x8] sm:$0x7f] %vm203, %v209
  $region17: #{tpu_custom_call.1} parent=0 // pred_fallthru
    _
  // Predicated region
  $region18: #{tpu_custom_call.1} parent=0 // pred_check
    _
  $region19: #{tpu_custom_call.1} parent=0 // pred_check_branch
    %213 = sbr.rel (0) target = $region21
  $region20: #{tpu_custom_call.1} parent=0 // pred_region
    _
  $region21: #{tpu_custom_call.1} parent=0 // pred_fallthru
    _
  // Predicated region
  $region22: #{tpu_custom_call.1} parent=0 // pred_check
    _
  $region23: #{tpu_custom_call.1} parent=0 // pred_check_branch
    %215 = sbr.rel (0) target = $region25
  $region24: #{tpu_custom_call.1} parent=0 // pred_region
    _
  $region25: #{tpu_custom_call.1} parent=0 // pred_fallthru
    _

</llo_original>
